<compile_context>
chip_gen: v7x
topology: tpu7x:2x2x1
jax: 0.10.0
libtpu: 0.0.40
codegen_flags: <defaults>
</compile_context>

<pallas_src>
import functools

import jax
import jax.numpy as jnp
from jax.experimental import pallas as pl
from jax.experimental.pallas import tpu as pltpu

_EPS = 1e-10
_LANES = 128


def _dice_kernel(pred_ref, label_ref, out_ref, inter_ref, union_ref, *,
                 hw_valid, tile_pixels, n_full_tiles, total_tiles,
                 dense_label, ignore_index, approx_recip):
    """Grid = (N, hw_chunks, tiles_per_chunk).

    Blocks:
      pred : (1, C, T, 128)  native dtype (upcast to f32 in-kernel)
      label: (1, C, T, 128)  dense targets, or (1, T, 128) int32 class indices
      out  : (1, 1, 2, C)    f32 per-(batch, chunk) [inter; union] partial sums
    Scratch inter/union: (C, 8, 128) f32 accumulators, reset at t==0 and
    reduced to (C,) only at the last tile of each chunk.
    """
    ck = pl.program_id(1)
    t = pl.program_id(2)
    tiles_per_chunk = pl.num_programs(2)
    gtile = ck * tiles_per_chunk + t          # logical (unclamped) HW tile id

    @pl.when(t == 0)
    def _init():
        inter_ref[...] = jnp.zeros_like(inter_ref)
        union_ref[...] = jnp.zeros_like(union_ref)

    def _accumulate(masked):
        x = pred_ref[0].astype(jnp.float32)               # (C, T, L)
        C, T, L = x.shape
        ngrp, rem = divmod(T, 8)

        if masked:
            sub = jax.lax.broadcasted_iota(jnp.int32, (T, L), 0)
            lane = jax.lax.broadcasted_iota(jnp.int32, (T, L), 1)
            gidx = gtile * tile_pixels + sub * L + lane
            mask = gidx < hw_valid                        # (T, L) bool
            # Sanitize OOB garbage (possibly NaN) before the softmax.
            x = jnp.where(mask[None], x, 0.0)

        # Channel softmax as elementwise slab ops (VPU); exp + one reciprocal
        # per pixel on the EUP.
        m = jnp.max(x, axis=0, keepdims=True)
        e = jnp.exp(x - m)
        denom = jnp.sum(e, axis=0, keepdims=True)
        if approx_recip:
            prob = e * pl.reciprocal(denom, approx=True)
        else:
            prob = e / denom
        if masked:
            prob = jnp.where(mask[None], prob, 0.0)

        def _acc(ref, val, c=None):
            # Partial-sum the row axis into the (8, L) sublane accumulator;
            # handles T that is not a multiple of 8 (single-tile case).
            if c is None:                                  # val: (C, T, L)
                if ngrp > 0:
                    ref[...] += jnp.sum(
                        val[:, :ngrp * 8].reshape(C, ngrp, 8, L), axis=1)
                if rem > 0:
                    ref[:, :rem, :] += val[:, ngrp * 8:]
            else:                                          # val: (T, L)
                if ngrp > 0:
                    ref[c, :, :] += jnp.sum(
                        val[:ngrp * 8].reshape(ngrp, 8, L), axis=0)
                if rem > 0:
                    ref[c, :rem, :] += val[ngrp * 8:]

        if dense_label:
            y = label_ref[0].astype(jnp.float32)           # (C, T, L)
            if masked:
                y = jnp.where(mask[None], y, 0.0)
            _acc(inter_ref, prob * y)
            _acc(union_ref, prob + y)                      # fused union reduce
        else:
            lbl = label_ref[0]                             # (T, L) int32
            if masked:
                lbl = jnp.where(mask, lbl, -1)             # padded -> no class
            for c in range(C):
                y_c = lbl == c
                if 0 <= ignore_index < C:
                    y_c = jnp.logical_and(y_c, lbl != ignore_index)
                y_c = y_c.astype(jnp.float32)
                p_c = prob[c]
                _acc(inter_ref, p_c * y_c, c)
                _acc(union_ref, p_c + y_c, c)

    # Mask work only runs on tiles that actually touch padding/garbage.
    if n_full_tiles >= total_tiles:        # statically: no padding anywhere
        _accumulate(masked=False)
    elif n_full_tiles == 0:                # statically: every tile is ragged
        _accumulate(masked=True)
    else:
        @pl.when(gtile < n_full_tiles)
        def _unmasked():
            _accumulate(masked=False)

        @pl.when(gtile >= n_full_tiles)
        def _masked():
            _accumulate(masked=True)

    @pl.when(t == tiles_per_chunk - 1)
    def _finalize():
        out_ref[0, 0, 0, :] = jnp.sum(jnp.sum(inter_ref[...], axis=1), axis=1)
        out_ref[0, 0, 1, :] = jnp.sum(jnp.sum(union_ref[...], axis=1), axis=1)


def dice_loss(pred, label, log_loss=False, *, weight=None, ignore_index=-100,
              tile_rows=None, hw_chunks=None, approx_recip=True):
    """DiceLoss.forward.

    pred : (N, C, H, W) float (f32/bf16, streamed in native dtype).
    label: (N, C, H, W) dense targets (any float/int dtype), or
           (N, H, W) integer class indices (streamed as int32, one-hot built
           in-kernel).  Indices outside [0, C) or equal to ignore_index get an
           all-zero one-hot row, matching mmseg's _expand_onehot_labels.
    Returns a scalar f32 loss.
    """
    # TODO(synk): `weight` is unused (the reference forward discards it too).
    del weight
    N, C, H, W = pred.shape
    dense_label = label.ndim == 4
    if dense_label:
        assert label.shape == pred.shape
    else:
        assert label.shape == (N, H, W), "label must be (N,C,H,W) or (N,H,W)"

    HW = H * W
    rows = -(-HW // _LANES)               # ceil(HW / 128)
    HW128 = rows * _LANES

    # ---- tile sizing: biggest row-tile such that double-buffered inputs plus
    # f32 in-kernel temporaries fit a conservative VMEM budget. ----
    if tile_rows is None:
        p_bytes = jnp.dtype(pred.dtype).itemsize
        l_row = C * jnp.dtype(label.dtype).itemsize if dense_label else 4
        per_row = (2 * C * _LANES * p_bytes       # pred, double-buffered
                   + 2 * _LANES * l_row           # label, double-buffered
                   + 6 * C * _LANES * 4)          # f32 temporaries (x,e,prob,y,...)
        budget = 20 * 1024 * 1024
        tile_rows = min(512, max(8, budget // per_row))
    tile_rows = int(tile_rows)
    if tile_rows >= rows:
        tile_rows = rows                  # single tile == full rows dim
    else:
        tile_rows = max(8, (tile_rows // 8) * 8)

    tile_pixels = tile_rows * _LANES
    n_tiles = -(-rows // tile_rows)
    n_full_tiles = HW // tile_pixels      # tiles with no padded/garbage pixels

    # Parallel HW chunks keep both v7x TensorCores busy at batch size 1
    # (a no-op on single-TC v5e/v6e).
    if hw_chunks is None:
        hw_chunks = 2 if N == 1 else 1
    hw_chunks = max(1, min(int(hw_chunks), n_tiles))
    tiles_per_chunk = -(-n_tiles // hw_chunks)
    total_tiles = hw_chunks * tiles_per_chunk

    # ---- inputs: lane-dense (.., rows, 128) view; no dtype cast in wrapper;
    # pad only to the 128-lane multiple (zero-copy when HW % 128 == 0). ----
    p = pred.reshape(N, C, HW)
    if HW128 != HW:
        p = jnp.pad(p, ((0, 0), (0, 0), (0, HW128 - HW)))
    p = p.reshape(N, C, rows, _LANES)

    def _row_map(b, ck, t):
        # Clamp: chunk-padding tiles re-read the last real tile; their
        # contribution is masked to zero in-kernel.
        g = jnp.minimum(ck * tiles_per_chunk + t, n_tiles - 1)
        return (b, 0, g, 0)

    pred_spec = pl.BlockSpec((1, C, tile_rows, _LANES), _row_map)

    if dense_label:
        l = label.reshape(N, C, HW)
        if HW128 != HW:
            l = jnp.pad(l, ((0, 0), (0, 0), (0, HW128 - HW)))
        l = l.reshape(N, C, rows, _LANES)
        lab_spec = pl.BlockSpec((1, C, tile_rows, _LANES), _row_map)
    else:
        l = label.reshape(N, HW)
        if l.dtype != jnp.int32:
            l = l.astype(jnp.int32)
        if HW128 != HW:
            l = jnp.pad(l, ((0, 0), (0, HW128 - HW)), constant_values=-1)
        l = l.reshape(N, rows, _LANES)

        def _lab_map(b, ck, t):
            g = jnp.minimum(ck * tiles_per_chunk + t, n_tiles - 1)
            return (b, g, 0)

        lab_spec = pl.BlockSpec((1, tile_rows, _LANES), _lab_map)

    kernel = functools.partial(
        _dice_kernel,
        hw_valid=HW, tile_pixels=tile_pixels,
        n_full_tiles=n_full_tiles, total_tiles=total_tiles,
        dense_label=dense_label, ignore_index=int(ignore_index),
        approx_recip=approx_recip)

    parts = pl.pallas_call(
        kernel,
        out_shape=jax.ShapeDtypeStruct((N, hw_chunks, 2, C), jnp.float32),
        grid=(N, hw_chunks, tiles_per_chunk),
        in_specs=[pred_spec, lab_spec],
        out_specs=pl.BlockSpec((1, 1, 2, C), lambda b, ck, t: (b, ck, 0, 0)),
        scratch_shapes=[pltpu.VMEM((C, 8, _LANES), jnp.float32),
                        pltpu.VMEM((C, 8, _LANES), jnp.float32)],
        compiler_params=pltpu.CompilerParams(
            dimension_semantics=("parallel", "parallel", "arbitrary"),
            vmem_limit_bytes=48 * 1024 * 1024),
    )(p, l)

    inter = jnp.sum(parts[:, :, 0, :], axis=1)    # (N, C)
    union = jnp.sum(parts[:, :, 1, :], axis=1)    # (N, C)
    dice = (2.0 * inter + _EPS) / (union + _EPS)
    if log_loss:
        return -jnp.mean(jnp.log(dice))
    return jnp.mean(1.0 - dice)


def _dice_loss_ref(pred, label, log_loss=False):
    """Pure-JAX reference mirroring the PyTorch forward (dense labels)."""
    prob = jax.nn.softmax(pred.astype(jnp.float32), axis=1)
    label = label.astype(jnp.float32)
    inter = jnp.einsum('bchw,bchw->bc', prob, label)
    union = jnp.einsum('bchw->bc', prob) + jnp.einsum('bchw->bc', label)
    dice_score = (2.0 * inter + _EPS) / (union + _EPS)
    if log_loss:
        return -jnp.mean(jnp.log(dice_score))
    return jnp.mean(1.0 - dice_score)


if __name__ == "__main__":
    key = jax.random.PRNGKey(0)
    ks = jax.random.split(key, 8)
    # Tolerance covers the EUP approximate reciprocal in the softmax
    # normalization (~1e-4 relative); pass approx_recip=False for exact parity.
    ATOL = RTOL = 1e-3

    # 1) dense one-hot labels (documented (N, C, H, W) path), single tile.
    N, C, H, W = 2, 4, 16, 16
    pred = jax.random.normal(ks[0], (N, C, H, W), dtype=jnp.float32)
    cls = jax.random.randint(ks[1], (N, H, W), 0, C)
    label = jax.nn.one_hot(cls, C, axis=1, dtype=jnp.float32)
    out = jax.block_until_ready(dice_loss(pred, label))
    ref = _dice_loss_ref(pred, label)
    assert jnp.allclose(out, ref, atol=ATOL, rtol=RTOL), (out, ref)
    out_log = jax.block_until_ready(dice_loss(pred, label, log_loss=True))
    ref_log = _dice_loss_ref(pred, label, log_loss=True)
    assert jnp.allclose(out_log, ref_log, atol=ATOL, rtol=RTOL), (out_log, ref_log)

    # 2) dense labels, HW not a multiple of 128, several tiles -> exercises the
    #    accumulator + gated boundary-mask path (pred and label both masked).
    N2, C2, H2, W2 = 2, 4, 48, 50        # HW = 2400 -> rows = 19 -> 3 tiles
    pred2 = jax.random.normal(ks[2], (N2, C2, H2, W2), dtype=jnp.float32)
    cls2 = jax.random.randint(ks[3], (N2, H2, W2), 0, C2)
    label2 = jax.nn.one_hot(cls2, C2, axis=1, dtype=jnp.float32)
    out2 = jax.block_until_ready(dice_loss(pred2, label2, tile_rows=8))
    ref2 = _dice_loss_ref(pred2, label2)
    assert jnp.allclose(out2, ref2, atol=ATOL, rtol=RTOL), (out2, ref2)

    # 3) class-index labels streamed as int32 (one-hot built in-kernel), bf16
    #    pred, batch = 1 (HW chunked across two parallel chunks for v7x),
    #    ignore_index pixels, ragged last tile + clamped chunk-padding tile.
    N3, C3, H3, W3 = 1, 4, 50, 50        # HW = 2500 -> rows = 20 -> 3 tiles
    pred3 = jax.random.normal(ks[4], (N3, C3, H3, W3), dtype=jnp.float32)
    pred3 = pred3.astype(jnp.bfloat16)
    cls3 = jax.random.randint(ks[5], (N3, H3, W3), 0, C3)
    ign = jax.random.bernoulli(ks[6], 0.1, (N3, H3, W3))
    cls3 = jnp.where(ign, 255, cls3).astype(jnp.int32)
    out3 = jax.block_until_ready(
        dice_loss(pred3, cls3, ignore_index=255, tile_rows=8))
    label3 = jax.nn.one_hot(cls3, C3, axis=1, dtype=jnp.float32)  # 255 -> zeros
    ref3 = _dice_loss_ref(pred3, label3)
    assert jnp.allclose(out3, ref3, atol=ATOL, rtol=RTOL), (out3, ref3)

    print("KERNEL_OK")
</pallas_src>

<mosaic_0001>
module attributes {stable_mosaic.version = 11 : i64} {
  func.func @_dice_kernel(%arg0: i32, %arg1: i32, %arg2: i32, %arg3: memref<1x4x2x128xf32, #tpu.memory_space<vmem>>, %arg4: memref<1x4x2x128xf32, #tpu.memory_space<vmem>>, %arg5: memref<1x1x2x4xf32, #tpu.memory_space<vmem>>, %arg6: memref<4x8x128xf32, #tpu.memory_space<vmem>>, %arg7: memref<4x8x128xf32, #tpu.memory_space<vmem>>) attributes {dimension_semantics = [#tpu.dimension_semantics<parallel>, #tpu.dimension_semantics<parallel>, #tpu.dimension_semantics<arbitrary>], iteration_bounds = array<i64: 2, 1, 1>, scalar_prefetch = 0 : i64, scratch_operands = 2 : i64, tpu.core_type = #tpu.core_type<tc>, window_params = [{transform_indices = @transform_0, window_bounds = array<i64: 1, 4, 2, 128>}, {transform_indices = @transform_1, window_bounds = array<i64: 1, 4, 2, 128>}, {transform_indices = @transform_2, window_bounds = array<i64: 1, 1, 2, 4>}]} {
    %c0_i32 = arith.constant 0 : i32
    %0 = arith.cmpi eq, %arg2, %c0_i32 : i32
    %1 = arith.extui %0 : i1 to i32
    %c0_i32_0 = arith.constant 0 : i32
    %2 = arith.cmpi ne, %1, %c0_i32_0 : i32
    scf.if %2 {
      %cst_23 = arith.constant 0.000000e+00 : f32
      %28 = vector.broadcast %cst_23 : f32 to vector<4x8x128xf32>
      %c0_24 = arith.constant 0 : index
      %c0_25 = arith.constant 0 : index
      %c0_26 = arith.constant 0 : index
      %29 = vector.load %arg6[%c0_24, %c0_25, %c0_26] : memref<4x8x128xf32, #tpu.memory_space<vmem>>, vector<4x8x128xf32>
      tpu.vector_store %arg6[%c0_24, %c0_25, %c0_26], %28 {strides = array<i32>} : memref<4x8x128xf32, #tpu.memory_space<vmem>>, vector<4x8x128xf32>,
      %cst_27 = arith.constant 0.000000e+00 : f32
      %30 = vector.broadcast %cst_27 : f32 to vector<4x8x128xf32>
      %c0_28 = arith.constant 0 : index
      %c0_29 = arith.constant 0 : index
      %c0_30 = arith.constant 0 : index
      %31 = vector.load %arg7[%c0_28, %c0_29, %c0_30] : memref<4x8x128xf32, #tpu.memory_space<vmem>>, vector<4x8x128xf32>
      tpu.vector_store %arg7[%c0_28, %c0_29, %c0_30], %30 {strides = array<i32>} : memref<4x8x128xf32, #tpu.memory_space<vmem>>, vector<4x8x128xf32>,
    } else {
    }
    %c0 = arith.constant 0 : index
    %c0_1 = arith.constant 0 : index
    %c0_2 = arith.constant 0 : index
    %c0_3 = arith.constant 0 : index
    %3 = vector.load %arg3[%c0, %c0_1, %c0_2, %c0_3] : memref<1x4x2x128xf32, #tpu.memory_space<vmem>>, vector<1x4x2x128xf32>
    %4 = vector.shape_cast %3 : vector<1x4x2x128xf32> to vector<4x2x128xf32>
    %cst = arith.constant dense<0xFF800000> : vector<2x128xf32>
    %5 = vector.multi_reduction <maximumf>, %4, %cst [0] : vector<4x2x128xf32> to vector<2x128xf32>
    %6 = vector.shape_cast %5 : vector<2x128xf32> to vector<1x2x128xf32>
    %7 = vector.broadcast %6 : vector<1x2x128xf32> to vector<4x2x128xf32>
    %8 = arith.subf %4, %7 : vector<4x2x128xf32>
    %9 = math.exp %8 : vector<4x2x128xf32>
    %cst_4 = arith.constant dense<0.000000e+00> : vector<2x128xf32>
    %10 = vector.multi_reduction <add>, %9, %cst_4 [0] : vector<4x2x128xf32> to vector<2x128xf32>
    %11 = vector.shape_cast %10 : vector<2x128xf32> to vector<1x2x128xf32>
    %12 = tpu.reciprocal %11 {approx = true} : vector<1x2x128xf32> -> vector<1x2x128xf32>
    %13 = vector.broadcast %12 : vector<1x2x128xf32> to vector<4x2x128xf32>
    %14 = arith.mulf %9, %13 : vector<4x2x128xf32>
    %c0_5 = arith.constant 0 : index
    %c0_6 = arith.constant 0 : index
    %c0_7 = arith.constant 0 : index
    %c0_8 = arith.constant 0 : index
    %15 = vector.load %arg4[%c0_5, %c0_6, %c0_7, %c0_8] : memref<1x4x2x128xf32, #tpu.memory_space<vmem>>, vector<1x4x2x128xf32>
    %16 = vector.shape_cast %15 : vector<1x4x2x128xf32> to vector<4x2x128xf32>
    %17 = arith.mulf %14, %16 : vector<4x2x128xf32>
    %c0_9 = arith.constant 0 : index
    %c0_10 = arith.constant 0 : index
    %c0_11 = arith.constant 0 : index
    %18 = vector.load %arg6[%c0_9, %c0_10, %c0_11] : memref<4x8x128xf32, #tpu.memory_space<vmem>>, vector<4x2x128xf32>
    %19 = arith.addf %18, %17 : vector<4x2x128xf32>
    %c0_12 = arith.constant 0 : index
    %c0_13 = arith.constant 0 : index
    %c0_14 = arith.constant 0 : index
    %20 = vector.load %arg6[%c0_12, %c0_13, %c0_14] : memref<4x8x128xf32, #tpu.memory_space<vmem>>, vector<4x2x128xf32>
    tpu.vector_store %arg6[%c0_12, %c0_13, %c0_14], %19 {strides = array<i32>} : memref<4x8x128xf32, #tpu.memory_space<vmem>>, vector<4x2x128xf32>,
    %21 = arith.addf %14, %16 : vector<4x2x128xf32>
    %c0_15 = arith.constant 0 : index
    %c0_16 = arith.constant 0 : index
    %c0_17 = arith.constant 0 : index
    %22 = vector.load %arg7[%c0_15, %c0_16, %c0_17] : memref<4x8x128xf32, #tpu.memory_space<vmem>>, vector<4x2x128xf32>
    %23 = arith.addf %22, %21 : vector<4x2x128xf32>
    %c0_18 = arith.constant 0 : index
    %c0_19 = arith.constant 0 : index
    %c0_20 = arith.constant 0 : index
    %24 = vector.load %arg7[%c0_18, %c0_19, %c0_20] : memref<4x8x128xf32, #tpu.memory_space<vmem>>, vector<4x2x128xf32>
    tpu.vector_store %arg7[%c0_18, %c0_19, %c0_20], %23 {strides = array<i32>} : memref<4x8x128xf32, #tpu.memory_space<vmem>>, vector<4x2x128xf32>,
    %c0_i32_21 = arith.constant 0 : i32
    %25 = arith.cmpi eq, %arg2, %c0_i32_21 : i32
    %26 = arith.extui %25 : i1 to i32
    %c0_i32_22 = arith.constant 0 : i32
    %27 = arith.cmpi ne, %26, %c0_i32_22 : i32
    scf.if %27 {
      %c0_23 = arith.constant 0 : index
      %c0_24 = arith.constant 0 : index
      %c0_25 = arith.constant 0 : index
      %28 = vector.load %arg6[%c0_23, %c0_24, %c0_25] : memref<4x8x128xf32, #tpu.memory_space<vmem>>, vector<4x8x128xf32>
      %cst_26 = arith.constant dense<0.000000e+00> : vector<4x128xf32>
      %29 = vector.multi_reduction <add>, %28, %cst_26 [1] : vector<4x8x128xf32> to vector<4x128xf32>
      %cst_27 = arith.constant dense<0.000000e+00> : vector<4xf32>
      %30 = vector.multi_reduction <add>, %29, %cst_27 [1] : vector<4x128xf32> to vector<4xf32>
      %c0_28 = arith.constant 0 : index
      %c0_29 = arith.constant 0 : index
      %c0_30 = arith.constant 0 : index
      %c0_31 = arith.constant 0 : index
      %31 = vector.load %arg5[%c0_28, %c0_29, %c0_30, %c0_31] : memref<1x1x2x4xf32, #tpu.memory_space<vmem>>, vector<1x1x1x4xf32>
      %32 = vector.shape_cast %31 : vector<1x1x1x4xf32> to vector<4xf32>
      %33 = vector.shape_cast %30 : vector<4xf32> to vector<1x1x1x4xf32>
      tpu.vector_store %arg5[%c0_28, %c0_29, %c0_30, %c0_31], %33 {strides = array<i32>} : memref<1x1x2x4xf32, #tpu.memory_space<vmem>>, vector<1x1x1x4xf32>,
      %c0_32 = arith.constant 0 : index
      %c0_33 = arith.constant 0 : index
      %c0_34 = arith.constant 0 : index
      %34 = vector.load %arg7[%c0_32, %c0_33, %c0_34] : memref<4x8x128xf32, #tpu.memory_space<vmem>>, vector<4x8x128xf32>
      %cst_35 = arith.constant dense<0.000000e+00> : vector<4x128xf32>
      %35 = vector.multi_reduction <add>, %34, %cst_35 [1] : vector<4x8x128xf32> to vector<4x128xf32>
      %cst_36 = arith.constant dense<0.000000e+00> : vector<4xf32>
      %36 = vector.multi_reduction <add>, %35, %cst_36 [1] : vector<4x128xf32> to vector<4xf32>
      %c0_37 = arith.constant 0 : index
      %c0_38 = arith.constant 0 : index
      %c1 = arith.constant 1 : index
      %c0_39 = arith.constant 0 : index
      %37 = vector.load %arg5[%c0_37, %c0_38, %c1, %c0_39] : memref<1x1x2x4xf32, #tpu.memory_space<vmem>>, vector<1x1x1x4xf32>
      %38 = vector.shape_cast %37 : vector<1x1x1x4xf32> to vector<4xf32>
      %39 = vector.shape_cast %36 : vector<4xf32> to vector<1x1x1x4xf32>
      tpu.vector_store %arg5[%c0_37, %c0_38, %c1, %c0_39], %39 {strides = array<i32>} : memref<1x1x2x4xf32, #tpu.memory_space<vmem>>, vector<1x1x1x4xf32>,
    } else {
    }
    return
  }
  func.func @transform_0(%arg0: i32, %arg1: i32, %arg2: i32) -> (i32, i32, i32, i32) {
    %c1_i32 = arith.constant 1 : i32
    %0 = arith.muli %arg1, %c1_i32 : i32
    %1 = arith.addi %0, %arg2 : i32
    %c0_i32 = arith.constant 0 : i32
    %2 = arith.minsi %1, %c0_i32 : i32
    %c0_i32_0 = arith.constant 0 : i32
    %c0_i32_1 = arith.constant 0 : i32
    %c0_i32_2 = arith.constant 0 : i32
    return %arg0, %c0_i32_0, %2, %c0_i32_1 : i32, i32, i32, i32
  }
  func.func @transform_1(%arg0: i32, %arg1: i32, %arg2: i32) -> (i32, i32, i32, i32) {
    %c1_i32 = arith.constant 1 : i32
    %0 = arith.muli %arg1, %c1_i32 : i32
    %1 = arith.addi %0, %arg2 : i32
    %c0_i32 = arith.constant 0 : i32
    %2 = arith.minsi %1, %c0_i32 : i32
    %c0_i32_0 = arith.constant 0 : i32
    %c0_i32_1 = arith.constant 0 : i32
    %c0_i32_2 = arith.constant 0 : i32
    return %arg0, %c0_i32_0, %2, %c0_i32_1 : i32, i32, i32, i32
  }
  func.func @transform_2(%arg0: i32, %arg1: i32, %arg2: i32) -> (i32, i32, i32, i32) {
    %c0_i32 = arith.constant 0 : i32
    %c0_i32_0 = arith.constant 0 : i32
    %c0_i32_1 = arith.constant 0 : i32
    return %arg0, %arg1, %c0_i32, %c0_i32_0 : i32, i32, i32, i32
  }
}

</mosaic_0001>

<llo_original>
// kernel: tpu_custom_call.1
$region0: #{tpu_custom_call.1}
  #allocation0 [shape = 'u32[]', space=smem, size = 0x4, offset = 0x4, fixed_abs, tag = 'smem constant byte address 0x4 - core index']
  #allocation1 [shape = 'u32[144,128]{1,0:T(1,128)}', space=vmem, size = 0x12000, scoped, tag = 'internal scratch']
  #allocation2 [shape = 'f32[4,8,128]{2,1,0:T(8,128)}', space=vmem, size = 0x4000, scoped, tag = 'scratch operand']
  #allocation3 [shape = 'f32[4,8,128]{2,1,0:T(8,128)}', space=vmem, size = 0x4000, scoped, tag = 'scratch operand']
  %s0 = inlined_call_operand.hbm [shape: f32[2,4,2,128], index: 0, kind: input, shape index: {}]
  %s1 = inlined_call_operand.hbm [shape: f32[2,4,2,128], index: 1, kind: input, shape index: {}]
  %s2 = inlined_call_operand.hbm [shape: f32[2,1,2,4], index: 2, kind: output, shape index: {}]
  %s3 = sld [smem:[#allocation0]]
  $region57: #{tpu_custom_call.1} parent=0
    _
  %s5 = ssub.s32 1, %s3
  %s6 = scalar_select 0, %s5, %s3
  $region1: #{tpu_custom_call.1} parent=0
    #allocation4 [shape = 'u8[8192]{0}', space=vmem, size = 0x2000, scoped, tag = 'input window, operand 0']
    #allocation5 [shape = 's32[2]{0}', space=sflag, size = 0x8, scoped, tag = 'scoped memory for tpu_custom_call.1']
    #allocation6 [shape = 's32[2]{0}', space=sflag, size = 0x8, scoped, tag = 'scoped memory for tpu_custom_call.1']
    #allocation7 [shape = 'u8[8192]{0}', space=vmem, size = 0x2000, scoped, tag = 'input window, operand 1']
    #allocation8 [shape = 's32[2]{0}', space=sflag, size = 0x8, scoped, tag = 'scoped memory for tpu_custom_call.1']
    #allocation9 [shape = 'u8[2048]{0}', space=vmem, size = 0x800, scoped, tag = 'output window, operand 0']
    %7 = vsyncpa [#allocation5], 0
    %s8 = scalar_lea.sflag [#allocation5], 1
    %9 = vsyncpa %s8, 0
    %10 = vsyncpa [#allocation8], 0
    %s11 = scalar_lea.sflag [#allocation8], 1
    %12 = vsyncpa %s11, 0
    %13 = vsyncpa [#allocation6], 0
    %s14 = scalar_lea.sflag [#allocation6], 1
    %15 = vsyncpa %s14, 0
    loop: start=0, step=1, limit=4
    $region2: #{tpu_custom_call.1} parent=1 // loop_pre_header
      _
    $region3: #{tpu_custom_call.1} parent=1 // loop_header
      %s17 = sphi 0, %s21
      %p18 = scmp.ge.s32.totalorder %s17, 4
      %s24 = sphi 0, %s43
      %s25 = sphi 0, %s39
      %s26 = sphi 0, %s35
      %s27 = sphi 0, %s24
      %s28 = sphi 0, %s25
      %s29 = sphi 0, %s26
      %s30 = sphi 0, %s27
      %s31 = sphi 0, %s28
      %s32 = sphi 0, %s29
      %s54 = sphi 0, %s56
      %s57 = sphi 0, %s54
      %s58 = sphi 0, %s57
      %s74 = sphi 0, %s58
      %s88 = sphi 0, %s90
      %s91 = sphi 0, %s88
      %s92 = sphi 0, %s91
      %s108 = sphi 0, %s92
      %s116 = sphi 0, %s118
      %s119 = sphi 0, %s116
      %s120 = sphi 0, %s119
      %s136 = sphi 0, %s120
    $region4: #{tpu_custom_call.1} parent=1 // loop_header_branch
      %20 = sbr.rel (%p18) target = $region8
    $region5: #{tpu_custom_call.1} parent=1 // loop_body
      %s22 = ssub.s32 %s17, 1
      %s23 = ssub.s32 %s17, 2
      %s33 = sadd.s32 1, %s26
      %p34 = scmp.ge.s32.totalorder %s33, 1
      %s35 = scalar_select %p34, 0, %s33
      %s36 = sadd.s32 1, %s25
      %s37 = scalar_select %p34, %s36, %s25
      %p38 = scmp.ge.s32.totalorder %s37, 1
      %s39 = scalar_select %p38, 0, %s37
      %s40 = sadd.s32 1, %s24
      %s41 = scalar_select %p38, %s40, %s24
      %p42 = scmp.ge.s32.totalorder %s41, 2
      %s43 = scalar_select %p42, 0, %s41
      %s44 = sadd.s32 %s25, %s26
      %p45 = scmp.lt.s32.totalorder %s44, 0
      %s46 = scalar_select %p45, %s44, 0
      %s47 = sadd.s32 %s39, %s35
      %p48 = scmp.lt.s32.totalorder %s47, 0
      %s49 = scalar_select %p48, %s47, 0
      %s50 = ssub.s32 %s24, %s43
      %s51 = ssub.s32 %s46, %s49
      %s52 = sor.u32 %s50, %s51
      %p53 = scmp.eq.s32.totalorder %s52, 0
      %s55 = sadd.s32 %s54, 1
      %s56 = scalar_select %p53, %s54, %s55
      %p59 = pneg %p53
      %p60 = scmp.eq.s32.totalorder %s17, 1
      %p61 = por %p59, %p60
      %p62 = scmp.ne.s32.totalorder %s54, %s57
      %p63 = scmp.eq.s32.totalorder %s17, 0
      %p64 = por %p62, %p63
      %p65 = scmp.ne.s32.totalorder %s54, %s57
      %p66 = scmp.eq.s32.totalorder %s22, 1
      %p67 = por %p65, %p66
      %p68 = scmp.ne.s32.totalorder %s57, %s58
      %p69 = scmp.eq.s32.totalorder %s22, 0
      %p70 = por %p68, %p69
      %p71 = scmp.ne.s32.totalorder %s57, %s58
      %p72 = scmp.eq.s32.totalorder %s23, 1
      %p73 = por %p71, %p72
      %p75 = scmp.ne.s32.totalorder %s58, %s74
      %p76 = scmp.eq.s32.totalorder %s23, 0
      %p77 = por %p75, %p76
      %s78 = sadd.s32 %s25, %s26
      %p79 = scmp.lt.s32.totalorder %s78, 0
      %s80 = scalar_select %p79, %s78, 0
      %s81 = sadd.s32 %s39, %s35
      %p82 = scmp.lt.s32.totalorder %s81, 0
      %s83 = scalar_select %p82, %s81, 0
      %s84 = ssub.s32 %s24, %s43
      %s85 = ssub.s32 %s80, %s83
      %s86 = sor.u32 %s84, %s85
      %p87 = scmp.eq.s32.totalorder %s86, 0
      %s89 = sadd.s32 %s88, 1
      %s90 = scalar_select %p87, %s88, %s89
      %p93 = pneg %p87
      %p94 = scmp.eq.s32.totalorder %s17, 1
      %p95 = por %p93, %p94
      %p96 = scmp.ne.s32.totalorder %s88, %s91
      %p97 = scmp.eq.s32.totalorder %s17, 0
      %p98 = por %p96, %p97
      %p99 = scmp.ne.s32.totalorder %s88, %s91
      %p100 = scmp.eq.s32.totalorder %s22, 1
      %p101 = por %p99, %p100
      %p102 = scmp.ne.s32.totalorder %s91, %s92
      %p103 = scmp.eq.s32.totalorder %s22, 0
      %p104 = por %p102, %p103
      %p105 = scmp.ne.s32.totalorder %s91, %s92
      %p106 = scmp.eq.s32.totalorder %s23, 1
      %p107 = por %p105, %p106
      %p109 = scmp.ne.s32.totalorder %s92, %s108
      %p110 = scmp.eq.s32.totalorder %s23, 0
      %p111 = por %p109, %p110
      %s112 = ssub.s32 %s24, %s43
      %s113 = ssub.s32 %s25, %s39
      %s114 = sor.u32 %s112, %s113
      %p115 = scmp.eq.s32.totalorder %s114, 0
      %s117 = sadd.s32 %s116, 1
      %s118 = scalar_select %p115, %s116, %s117
      %p121 = pneg %p115
      %p122 = scmp.eq.s32.totalorder %s17, 1
      %p123 = por %p121, %p122
      %p124 = scmp.ne.s32.totalorder %s116, %s119
      %p125 = scmp.eq.s32.totalorder %s17, 0
      %p126 = por %p124, %p125
      %p127 = scmp.ne.s32.totalorder %s116, %s119
      %p128 = scmp.eq.s32.totalorder %s22, 1
      %p129 = por %p127, %p128
      %p130 = scmp.ne.s32.totalorder %s119, %s120
      %p131 = scmp.eq.s32.totalorder %s22, 0
      %p132 = por %p130, %p131
      %p133 = scmp.ne.s32.totalorder %s119, %s120
      %p134 = scmp.eq.s32.totalorder %s23, 1
      %p135 = por %p133, %p134
      %p137 = scmp.ne.s32.totalorder %s120, %s136
      %p138 = scmp.eq.s32.totalorder %s23, 0
      %p139 = por %p137, %p138
      %p140 = scmp.le.s32.totalorder 1, %s17
      %p141 = scmp.lt.s32.totalorder %s17, 3
      %p142 = pnand %p140, %p141
      %p143 = pneg %p142
      // Predicated region
      $region9: #{tpu_custom_call.1} parent=5 // pred_check
        _
      $region10: #{tpu_custom_call.1} parent=5 // pred_check_branch
        %145 = sbr.rel (%p142) target = $region12
      $region11: #{tpu_custom_call.1} parent=5 // pred_region
        %s146 = ssub.s32 %s17, 1
      $region12: #{tpu_custom_call.1} parent=5 // pred_fallthru
        _
      %p147 = scmp.lt.s32.totalorder %s17, 2
      // Predicated region
      $region13: #{tpu_custom_call.1} parent=5 // pred_check
        %p148 = pneg %p147
      $region14: #{tpu_custom_call.1} parent=5 // pred_check_branch
        %150 = sbr.rel (%p148) target = $region16
      $region15: #{tpu_custom_call.1} parent=5 // pred_region
        // Predicated region
        $region17: #{tpu_custom_call.1} parent=15 // pred_check
          %p151 = pneg %p64
        $region18: #{tpu_custom_call.1} parent=15 // pred_check_branch
          %153 = sbr.rel (%p151) target = $region20
        $region19: #{tpu_custom_call.1} parent=15 // pred_region
          %s154 = sand.u32 %s54, 1
          %s155 = scalar_lea.sflag [#allocation5], %s154
          %s156 = sand.u32 %s54, 1
          %s157 = smul.addr %s156, 8
          %s158 = scalar_lea.vmem [#allocation4], %s157
          %s159 = sadd.s32 %s25, %s26
          %p160 = scmp.lt.s32.totalorder %s159, 0
          %s161 = scalar_select %p160, %s159, 0
          %s163 = ssub.s32 128, 128
          %164 = vsyncadd %s155, %s163
          %s165 = smul.addr %s24, 4
          %s166 = sadd.s32 %s161, %s165
          %s167 = smul.addr %s166, 32
          %s168 = scalar_lea.hbm %s0, %s167
          %s169 = sshll.u32 %s158, 4
          %s170 = int_to_ptr.vmem [resolvable:$true] %s169
          %175 = dma.hbm_to_vmem [thread:$0]  %s168, 128, %s170, %s155, 32, 32, 2
        $region20: #{tpu_custom_call.1} parent=15 // pred_fallthru
          _
        // Predicated region
        $region21: #{tpu_custom_call.1} parent=15 // pred_check
          %p176 = pneg %p98
        $region22: #{tpu_custom_call.1} parent=15 // pred_check_branch
          %178 = sbr.rel (%p176) target = $region24
        $region23: #{tpu_custom_call.1} parent=15 // pred_region
          %s179 = sand.u32 %s88, 1
          %s180 = scalar_lea.sflag [#allocation8], %s179
          %s181 = sand.u32 %s88, 1
          %s182 = smul.addr %s181, 8
          %s183 = scalar_lea.vmem [#allocation7], %s182
          %s184 = sadd.s32 %s25, %s26
          %p185 = scmp.lt.s32.totalorder %s184, 0
          %s186 = scalar_select %p185, %s184, 0
          %s188 = ssub.s32 128, 128
          %189 = vsyncadd %s180, %s188
          %s190 = smul.addr %s24, 4
          %s191 = sadd.s32 %s186, %s190
          %s192 = smul.addr %s191, 32
          %s193 = scalar_lea.hbm %s1, %s192
          %s194 = sshll.u32 %s183, 4
          %s195 = int_to_ptr.vmem [resolvable:$true] %s194
          %200 = dma.hbm_to_vmem [thread:$0]  %s193, 128, %s195, %s180, 32, 32, 2
        $region24: #{tpu_custom_call.1} parent=15 // pred_fallthru
          _
      $region16: #{tpu_custom_call.1} parent=5 // pred_fallthru
        _
      %p201 = scmp.le.s32.totalorder 1, %s17
      %p202 = scmp.lt.s32.totalorder %s17, 3
      %p203 = pnand %p201, %p202
      %p204 = pneg %p203
      // Predicated region
      $region25: #{tpu_custom_call.1} parent=5 // pred_check
        _
      $region26: #{tpu_custom_call.1} parent=5 // pred_check_branch
        %206 = sbr.rel (%p203) target = $region28
      $region27: #{tpu_custom_call.1} parent=5 // pred_region
        %s207 = ssub.s32 %s17, 1
        %s208 = sand.u32 %s57, 1
        %s209 = scalar_lea.sflag [#allocation5], %s208
        %s210 = sand.u32 %s57, 1
        %s211 = smul.addr %s210, 8
        %s212 = scalar_lea.vmem [#allocation4], %s211
        // Predicated region
        $region29: #{tpu_custom_call.1} parent=27 // pred_check
          %p213 = pneg %p70
        $region30: #{tpu_custom_call.1} parent=27 // pred_check_branch
          %215 = sbr.rel (%p213) target = $region32
        $region31: #{tpu_custom_call.1} parent=27 // pred_region
          %216 = dma.done %s209, 128
        $region32: #{tpu_custom_call.1} parent=27 // pred_fallthru
          _
        %s217 = sand.u32 %s91, 1
        %s218 = scalar_lea.sflag [#allocation8], %s217
        %s219 = sand.u32 %s91, 1
        %s220 = smul.addr %s219, 8
        %s221 = scalar_lea.vmem [#allocation7], %s220
        // Predicated region
        $region33: #{tpu_custom_call.1} parent=27 // pred_check
          %p222 = pneg %p104
        $region34: #{tpu_custom_call.1} parent=27 // pred_check_branch
          %224 = sbr.rel (%p222) target = $region36
        $region35: #{tpu_custom_call.1} parent=27 // pred_region
          %225 = dma.done %s218, 128
        $region36: #{tpu_custom_call.1} parent=27 // pred_fallthru
          _
        %s226 = sand.u32 %s57, 1
        %s227 = scalar_lea.sflag [#allocation5], %s226
        %s228 = sand.u32 %s57, 1
        %s229 = smul.addr %s228, 8
        %s230 = scalar_lea.vmem [#allocation4], %s229
        %p231 = pneg %p70
        %p232 = pneg %p67
        %s233 = sand.u32 %s91, 1
        %s234 = scalar_lea.sflag [#allocation8], %s233
        %s235 = sand.u32 %s91, 1
        %s236 = smul.addr %s235, 8
        %s237 = scalar_lea.vmem [#allocation7], %s236
        %p238 = pneg %p104
        %p239 = pneg %p101
        %p240 = pneg %p132
        %p241 = pneg %p129
        %s242 = sand.u32 %s119, 1
        %s243 = scalar_lea.sflag [#allocation6], %s242
        %s244 = sand.u32 %s119, 1
        %s245 = smul.addr %s244, 2
        %s246 = scalar_lea.vmem [#allocation9], %s245
        %s247 = sadd.s32 %s28, %s29
        %p248 = scmp.lt.s32.totalorder %s247, 0
        %s249 = scalar_select %p248, %s247, 0
        %s250 = sadd.s32 %s28, %s29
        %p251 = scmp.lt.s32.totalorder %s250, 0
        %s252 = scalar_select %p251, %s250, 0
        %p253 = scmp.eq.s32.totalorder %s29, 0
        // Predicated region
        $region37: #{tpu_custom_call.1} parent=27 // pred_check
          %p254 = pneg %p253
        $region38: #{tpu_custom_call.1} parent=27 // pred_check_branch
          %256 = sbr.rel (%p254) target = $region40
        $region39: #{tpu_custom_call.1} parent=27 // pred_region
          %257 = vst [vmem:[#allocation2] sm:$0xff] 0.0
          %258 = vst [vmem:[#allocation2 + $0x8] sm:$0xff] 0.0
          %259 = vst [vmem:[#allocation2 + $0x10] sm:$0xff] 0.0
          %260 = vst [vmem:[#allocation2 + $0x18] sm:$0xff] 0.0
          %261 = vst [vmem:[#allocation3] sm:$0xff] 0.0
          %262 = vst [vmem:[#allocation3 + $0x8] sm:$0xff] 0.0
          %263 = vst [vmem:[#allocation3 + $0x10] sm:$0xff] 0.0
          %264 = vst [vmem:[#allocation3 + $0x18] sm:$0xff] 0.0
        $region40: #{tpu_custom_call.1} parent=27 // pred_fallthru
          _
        %v265 = vld [vmem:[%s212] sm:$0x3]
        %v266 = vld [vmem:[%s212 + $0x2] sm:$0x3]
        %v267 = vld [vmem:[%s212 + $0x4] sm:$0x3]
        %v268 = vld [vmem:[%s212 + $0x6] sm:$0x3]
        %vm269 = vcmask 1041408
        %v270 = vsel %vm269, %v265, -inf
        %v271 = vsel %vm269, %v266, -inf
        %v272 = vsel %vm269, %v267, -inf
        %v273 = vsel %vm269, %v268, -inf
        %v274 = vmax.f32 %v270, %v271
        %v275 = vmax.f32 %v272, %v273
        %v276 = vmax.f32 %v274, %v275
        %v277 = vsub.f32 %v265, %v276
        %v278 = vsub.f32 %v266, %v276
        %v279 = vsub.f32 %v267, %v276
        %v280 = vsub.f32 %v268, %v276
        %v281 = vmul.f32 %v277, 1.442695
        %v282 = vpow.pop %v281
        %v283 = vmul.f32 %v278, 1.442695
        %v284 = vpow.pop %v283
        %v285 = vmul.f32 %v279, 1.442695
        %v286 = vpow.pop %v285
        %v287 = vmul.f32 %v280, 1.442695
        %v288 = vpow.pop %v287
        %v289 = vsel %vm269, %v282, 0.0
        %v290 = vsel %vm269, %v284, 0.0
        %v291 = vadd.f32 %v289, %v290
        %v292 = vsel %vm269, %v286, 0.0
        %v293 = vadd.f32 %v291, %v292
        %v294 = vsel %vm269, %v288, 0.0
        %v295 = vadd.f32 %v293, %v294
        %v296 = vrcp.pop %v295
        %v297 = vmul.f32 %v282, %v296
        %v298 = vmul.f32 %v284, %v296
        %v299 = vmul.f32 %v286, %v296
        %v300 = vmul.f32 %v288, %v296
        %v301 = vld [vmem:[%s221] sm:$0x3]
        %v302 = vld [vmem:[%s221 + $0x2] sm:$0x3]
        %v303 = vld [vmem:[%s221 + $0x4] sm:$0x3]
        %v304 = vld [vmem:[%s221 + $0x6] sm:$0x3]
        %v305 = vmul.f32 %v297, %v301
        %v306 = vmul.f32 %v298, %v302
        %v307 = vmul.f32 %v299, %v303
        %v308 = vmul.f32 %v300, %v304
        %v309 = vld [vmem:[#allocation2] sm:$0x3]
        %v310 = vld [vmem:[#allocation2 + $0x8] sm:$0x3]
        %v311 = vld [vmem:[#allocation2 + $0x10] sm:$0x3]
        %v312 = vld [vmem:[#allocation2 + $0x18] sm:$0x3]
        %v313 = vadd.f32 %v309, %v305
        %v314 = vadd.f32 %v310, %v306
        %v315 = vadd.f32 %v311, %v307
        %v316 = vadd.f32 %v312, %v308
        %317 = vst [vmem:[#allocation2] sm:$0x3] %v313
        %318 = vst [vmem:[#allocation2 + $0x8] sm:$0x3] %v314
        %319 = vst [vmem:[#allocation2 + $0x10] sm:$0x3] %v315
        %320 = vst [vmem:[#allocation2 + $0x18] sm:$0x3] %v316
        %v321 = vadd.f32 %v297, %v301
        %v322 = vadd.f32 %v298, %v302
        %v323 = vadd.f32 %v299, %v303
        %v324 = vadd.f32 %v300, %v304
        %v325 = vld [vmem:[#allocation3] sm:$0x3]
        %v326 = vld [vmem:[#allocation3 + $0x8] sm:$0x3]
        %v327 = vld [vmem:[#allocation3 + $0x10] sm:$0x3]
        %v328 = vld [vmem:[#allocation3 + $0x18] sm:$0x3]
        %v329 = vadd.f32 %v325, %v321
        %v330 = vadd.f32 %v326, %v322
        %v331 = vadd.f32 %v327, %v323
        %v332 = vadd.f32 %v328, %v324
        %333 = vst [vmem:[#allocation3] sm:$0x3] %v329
        %334 = vst [vmem:[#allocation3 + $0x8] sm:$0x3] %v330
        %335 = vst [vmem:[#allocation3 + $0x10] sm:$0x3] %v331
        %336 = vst [vmem:[#allocation3 + $0x18] sm:$0x3] %v332
        // Predicated region
        $region41: #{tpu_custom_call.1} parent=27 // pred_check
          %p337 = pneg %p253
        $region42: #{tpu_custom_call.1} parent=27 // pred_check_branch
          %339 = sbr.rel (%p337) target = $region44
        $region43: #{tpu_custom_call.1} parent=27 // pred_region
          %v340 = vld [vmem:[#allocation2] sm:$0xff]
          %v341 = vld [vmem:[#allocation2 + $0x8] sm:$0xff]
          %v342 = vld [vmem:[#allocation2 + $0x10] sm:$0xff]
          %v343 = vld [vmem:[#allocation2 + $0x18] sm:$0xff]
          %v344 = vrot.slane %v340, 4
          %v345 = vadd.f32 %v340, %v344
          %v346 = vrot.slane %v345, 2
          %v347 = vadd.f32 %v345, %v346
          %v348 = vrot.slane %v347, 1
          %v349 = vadd.f32 %v347, %v348
          %v350 = vrot.slane %v341, 4
          %v351 = vadd.f32 %v341, %v350
          %v352 = vrot.slane %v351, 2
          %v353 = vadd.f32 %v351, %v352
          %v354 = vrot.slane %v353, 1
          %v355 = vadd.f32 %v353, %v354
          %v356 = vrot.slane %v342, 4
          %v357 = vadd.f32 %v342, %v356
          %v358 = vrot.slane %v357, 2
          %v359 = vadd.f32 %v357, %v358
          %v360 = vrot.slane %v359, 1
          %v361 = vadd.f32 %v359, %v360
          %v362 = vrot.slane %v343, 4
          %v363 = vadd.f32 %v343, %v362
          %v364 = vrot.slane %v363, 2
          %v365 = vadd.f32 %v363, %v364
          %v366 = vrot.slane %v365, 1
          %v367 = vadd.f32 %v365, %v366
          %vm372 = vcmask 1041409
          %v373 = vsel %vm372, %v355, %v349
          %vm374 = vcmask 1042434
          %v375 = vsel %vm374, %v361, %v373
          %vm376 = vcmask 1043459
          %v377 = vsel %vm376, %v367, %v375
          %vm379 = vcmask 1043456
          %v380 = vsel %vm379, %v377, 0.0
          %381 = vadd.xlane.f32.xlu0 %v380
          %v382 = vpop.xlane.xlu0 %381
          %v384 = vlaneseq
          %v385 = vand.u32 %v384, 127
          %v386 = vlaneseq
          %v387 = vshrl.u32 %v386, 7
          %v388 = vsub.s32 %v385, %v387
          %v389 = vrot.slane %v382, %v388
          %vm391 = vcmask 24576
          %392 = vst.msk [vmem:[%s246] sm:$0x1] %vm391, %v389
          %v393 = vld [vmem:[#allocation3] sm:$0xff]
          %v394 = vld [vmem:[#allocation3 + $0x8] sm:$0xff]
          %v395 = vld [vmem:[#allocation3 + $0x10] sm:$0xff]
          %v396 = vld [vmem:[#allocation3 + $0x18] sm:$0xff]
          %v397 = vrot.slane %v393, 4
          %v398 = vadd.f32 %v393, %v397
          %v399 = vrot.slane %v398, 2
          %v400 = vadd.f32 %v398, %v399
          %v401 = vrot.slane %v400, 1
          %v402 = vadd.f32 %v400, %v401
          %v403 = vrot.slane %v394, 4
          %v404 = vadd.f32 %v394, %v403
          %v405 = vrot.slane %v404, 2
          %v406 = vadd.f32 %v404, %v405
          %v407 = vrot.slane %v406, 1
          %v408 = vadd.f32 %v406, %v407
          %v409 = vrot.slane %v395, 4
          %v410 = vadd.f32 %v395, %v409
          %v411 = vrot.slane %v410, 2
          %v412 = vadd.f32 %v410, %v411
          %v413 = vrot.slane %v412, 1
          %v414 = vadd.f32 %v412, %v413
          %v415 = vrot.slane %v396, 4
          %v416 = vadd.f32 %v396, %v415
          %v417 = vrot.slane %v416, 2
          %v418 = vadd.f32 %v416, %v417
          %v419 = vrot.slane %v418, 1
          %v420 = vadd.f32 %v418, %v419
          %v425 = vsel %vm372, %v408, %v402
          %v426 = vsel %vm374, %v414, %v425
          %v427 = vsel %vm376, %v420, %v426
          %v429 = vsel %vm379, %v427, 0.0
          %430 = vadd.xlane.f32.xlu0 %v429
          %v431 = vpop.xlane.xlu0 %430
          %v433 = vlaneseq
          %v434 = vshrl.u32 %v433, 7
          %v435 = vsub.s32 %v385, %v434
          %v436 = vrot.slane %v431, %v435
          %438 = vst.msk [vmem:[%s246 + $0x1] sm:$0x1] %vm391, %v436
        $region44: #{tpu_custom_call.1} parent=27 // pred_fallthru
          _
        %s439 = sand.u32 %s119, 1
        %s440 = scalar_lea.sflag [#allocation6], %s439
        %s441 = sand.u32 %s119, 1
        %s442 = smul.addr %s441, 2
        %s443 = scalar_lea.vmem [#allocation9], %s442
        // Predicated region
        $region45: #{tpu_custom_call.1} parent=27 // pred_check
          %p444 = pneg %p129
        $region46: #{tpu_custom_call.1} parent=27 // pred_check_branch
          %446 = sbr.rel (%p444) target = $region48
        $region47: #{tpu_custom_call.1} parent=27 // pred_region
          %s448 = ssub.s32 32, 32
          %449 = vsyncadd %s440, %s448
          %s450 = sadd.s32 %s28, %s27
          %s451 = smul.addr %s450, 32
          %s452 = scalar_lea.hbm %s2, %s451
          %s454 = sshll.u32 %s443, 4
          %s455 = int_to_ptr.vmem [resolvable:$true] %s454
          %457 = dma.vmem_to_hbm [thread:$0]  %s455, 32, %s452, %s440
        $region48: #{tpu_custom_call.1} parent=27 // pred_fallthru
          _
      $region28: #{tpu_custom_call.1} parent=5 // pred_fallthru
        _
      %p458 = scmp.le.s32.totalorder 2, %s17
      // Predicated region
      $region49: #{tpu_custom_call.1} parent=5 // pred_check
        %p459 = pneg %p458
      $region50: #{tpu_custom_call.1} parent=5 // pred_check_branch
        %461 = sbr.rel (%p459) target = $region52
      $region51: #{tpu_custom_call.1} parent=5 // pred_region
        %s462 = ssub.s32 %s17, 2
        // Predicated region
        $region53: #{tpu_custom_call.1} parent=51 // pred_check
          %p463 = pneg %p135
        $region54: #{tpu_custom_call.1} parent=51 // pred_check_branch
          %465 = sbr.rel (%p463) target = $region56
        $region55: #{tpu_custom_call.1} parent=51 // pred_region
          %s466 = sand.u32 %s120, 1
          %s467 = scalar_lea.sflag [#allocation6], %s466
          %s468 = sand.u32 %s120, 1
          %s469 = smul.addr %s468, 2
          %s470 = scalar_lea.vmem [#allocation9], %s469
          %471 = dma.done %s467, 32
        $region56: #{tpu_custom_call.1} parent=51 // pred_fallthru
          _
      $region52: #{tpu_custom_call.1} parent=5 // pred_fallthru
        _
    $region6: #{tpu_custom_call.1} parent=1 // loop_footer
      %s21 = sadd.s32 1, %s17
    $region7: #{tpu_custom_call.1} parent=1 // loop_footer_branch
      %16 = sbr.rel target = $region3
    $region8: #{tpu_custom_call.1} parent=1 // loop_exit
      _
    %472 = vsyncpa [#allocation5], 1
    %s473 = scalar_lea.sflag [#allocation5], 1
    %474 = vsyncpa %s473, 1
    %475 = vsyncpa [#allocation8], 1
    %s476 = scalar_lea.sflag [#allocation8], 1
    %477 = vsyncpa %s476, 1
    %478 = vsyncpa [#allocation6], 1
    %s479 = scalar_lea.sflag [#allocation6], 1
    %480 = vsyncpa %s479, 1

</llo_original>
